<compile_context>
chip_gen: v6e
topology: v6e:2x2x1
jax: 0.10.0
libtpu: 0.0.40
codegen_flags: <defaults>
</compile_context>

<pallas_src>
import functools

import jax
import jax.numpy as jnp
from jax import lax
from jax.experimental import pallas as pl
from jax.experimental.pallas import tpu as pltpu


def _round_up(x: int, m: int) -> int:
    return ((x + m - 1) // m) * m


def _concat_resolver_kernel(lower_ref, higher_ref, w_lo_ref, w_hi_ref, out_ref,
                            acc_ref, *, compute_dtype):
    # Fused "concat + linear": two MXU matmuls accumulated in a single f32 VMEM
    # scratch.  Weights stay in PyTorch (out, in) layout; contract dim 1 of both
    # operands.  Activations are cast to compute_dtype in-register (no wrapper
    # cast pass, no extra HBM traffic).
    k = pl.program_id(2)

    @pl.when(k == 0)
    def _init():
        acc_ref[...] = jnp.zeros_like(acc_ref)

    dn = (((1,), (1,)), ((), ()))
    lo = lower_ref[...].astype(compute_dtype)
    hi = higher_ref[...].astype(compute_dtype)
    acc_ref[...] += lax.dot_general(lo, w_lo_ref[...], dn,
                                    preferred_element_type=jnp.float32)
    acc_ref[...] += lax.dot_general(hi, w_hi_ref[...], dn,
                                    preferred_element_type=jnp.float32)

    @pl.when(k == pl.num_programs(2) - 1)
    def _finalize():
        out_ref[...] = acc_ref[...].astype(out_ref.dtype)


def _vmem_budget_and_limit():
    """Generation-aware tile budget and scoped-VMEM limit (bytes)."""
    vmem_cap = 128 * 1024 * 1024
    try:
        vmem_cap = int(pltpu.get_tpu_info().vmem_capacity_bytes)
    except Exception:
        pass
    if vmem_cap <= 64 * 1024 * 1024:
        # v7x-class: 64 MiB per TensorCore -> tight budget, leave headroom for
        # Mosaic internal scratch / spills.
        return 20 * 1024 * 1024, 48 * 1024 * 1024
    # v5e / v6e: 128 MiB physical, but small scoped defaults -> raise explicitly.
    return 48 * 1024 * 1024, 64 * 1024 * 1024


def _choose_tiles(M, d_pad, act_isz, w_isz, out_isz, comp_isz, row_pack, budget):
    """Pick (tm, tn, tk).  Prefers a fully weight-resident tiling (weights DMA'd
    once), then column tiling, then K tiling; only shrinks tm as a last resort."""

    def footprint(tm_, tn_, tk_):
        act = 2 * 2 * tm_ * tk_ * act_isz        # lower + higher, double-buffered
        wgt = 2 * 2 * tn_ * tk_ * w_isz          # two weight halves, double-buffered
        out = 2 * tm_ * tn_ * out_isz            # output tile, double-buffered
        acc = tm_ * tn_ * 4                      # f32 accumulator scratch
        tmp = tm_ * tn_ * 4 + 2 * tm_ * tk_ * comp_isz   # live dot result + in-kernel casts
        return act + wgt + out + acc + tmp

    tm = min(512, _round_up(M, row_pack))        # big row tiles; never > row count

    # 1) Weight-resident: whole padded weight halves live in VMEM, fetched once.
    if footprint(tm, d_pad, d_pad) <= budget:
        return tm, d_pad, d_pad

    # 2) Column tiling (weights streamed once per row tile), full contraction dim.
    for tn in (512, 256, 128):
        if tn < d_pad and d_pad % tn == 0 and footprint(tm, tn, d_pad) <= budget:
            return tm, tn, d_pad

    # 3) K tiling with MXU-shaped (tm, tn) and an f32 accumulator across K steps.
    tn = next((c for c in (512, 256, 128) if d_pad % c == 0), 128)
    for tk in (2048, 1024, 512, 256, 128):
        if d_pad % tk == 0 and footprint(tm, tn, tk) <= budget:
            return tm, tn, tk

    # 4) Last resort: shrink tm (keeps correctness under any budget).
    tk = 128
    while tm > row_pack and footprint(tm, tn, tk) > budget:
        tm = max(row_pack, _round_up(tm // 2, row_pack))
    return tm, tn, tk


def concatenation_resolver(lower, higher, weight, *, compute_dtype=None,
                           vmem_budget_bytes=None):
    """
    lower:  (B, N, D)  -- lower-level features
    higher: (B, N, D)  -- higher-level features
    weight: (D, 2*D)   -- PyTorch nn.Linear(2D, D, bias=False).weight
    returns (B, N, D) in lower.dtype

    compute_dtype=None (default) computes in the input dtype (faithful to the
    PyTorch module); pass jnp.bfloat16 for the fast MXU path (f32 accumulation).
    """
    B, N, D = lower.shape
    assert higher.shape == (B, N, D)
    assert weight.shape == (D, 2 * D)

    out_dtype = lower.dtype
    if higher.dtype != lower.dtype:
        higher = higher.astype(lower.dtype)
    if compute_dtype is None:
        compute_dtype = lower.dtype
    compute_dtype = jnp.dtype(compute_dtype)

    act_isz = jnp.dtype(lower.dtype).itemsize
    comp_isz = compute_dtype.itemsize
    out_isz = jnp.dtype(out_dtype).itemsize
    row_pack = 8 if act_isz >= 4 else 16          # sublane packing of the VMEM blocks

    M = B * N
    d_pad = _round_up(D, 128)                     # lane-align contraction + output dims

    budget, vmem_limit = _vmem_budget_and_limit()
    if vmem_budget_bytes is not None:
        budget = int(vmem_budget_bytes)
        vmem_limit = max(vmem_limit, min(2 * budget, 64 * 1024 * 1024))

    tm, tn, tk = _choose_tiles(M, d_pad, act_isz, comp_isz, out_isz, comp_isz,
                               row_pack, budget)

    lower2d = lower.reshape(M, D)
    higher2d = higher.reshape(M, D)
    if d_pad != D:
        # Contraction axis must be zero-padded (garbage K columns would corrupt
        # the dot); rows are NOT padded -- the partial row block is masked.
        lower2d = jnp.pad(lower2d, ((0, 0), (0, d_pad - D)))
        higher2d = jnp.pad(higher2d, ((0, 0), (0, d_pad - D)))

    # PyTorch (out, in)-layout halves; pad + cast fused with the slice pass.
    w_lo = weight[:, :D]
    w_hi = weight[:, D:]
    if d_pad != D:
        w_lo = jnp.pad(w_lo, ((0, d_pad - D), (0, d_pad - D)))
        w_hi = jnp.pad(w_hi, ((0, d_pad - D), (0, d_pad - D)))
    w_lo = w_lo.astype(compute_dtype)
    w_hi = w_hi.astype(compute_dtype)

    grid = (pl.cdiv(M, tm), d_pad // tn, d_pad // tk)
    kernel = functools.partial(_concat_resolver_kernel, compute_dtype=compute_dtype)

    out2d = pl.pallas_call(
        kernel,
        out_shape=jax.ShapeDtypeStruct((M, d_pad), out_dtype),
        grid_spec=pltpu.PrefetchScalarGridSpec(
            num_scalar_prefetch=0,
            grid=grid,
            in_specs=[
                pl.BlockSpec((tm, tk), lambda i, j, k: (i, k)),   # lower rows
                pl.BlockSpec((tm, tk), lambda i, j, k: (i, k)),   # higher rows
                pl.BlockSpec((tn, tk), lambda i, j, k: (j, k)),   # W[:, :D] tile
                pl.BlockSpec((tn, tk), lambda i, j, k: (j, k)),   # W[:, D:] tile
            ],
            out_specs=pl.BlockSpec((tm, tn), lambda i, j, k: (i, j)),
            scratch_shapes=[pltpu.VMEM((tm, tn), jnp.float32)],
        ),
        compiler_params=pltpu.CompilerParams(
            # Row/column axes parallel (sharding across v7x's 2 cores when the
            # grid carries >=2 tiles along them); K reduction axis last/arbitrary.
            dimension_semantics=("parallel", "parallel", "arbitrary"),
            vmem_limit_bytes=int(vmem_limit),
        ),
    )(lower2d, higher2d, w_lo, w_hi)

    if d_pad != D:
        out2d = out2d[:, :D]
    return out2d.reshape(B, N, D)


if __name__ == "__main__":
    key = jax.random.PRNGKey(0)

    def make_inputs(k, B, N, D):
        k1, k2, k3 = jax.random.split(k, 3)
        lower = jax.random.normal(k1, (B, N, D), dtype=jnp.float32)
        higher = jax.random.normal(k2, (B, N, D), dtype=jnp.float32)
        bound = 1.0 / jnp.sqrt(2.0 * D)  # nn.Linear default init range
        weight = jax.random.uniform(k3, (D, 2 * D), dtype=jnp.float32,
                                    minval=-bound, maxval=bound)
        return lower, higher, weight

    # Demo shape consistent with the module: batch=2, seq=8, embed_dim=32.
    B, N, D = 2, 8, 32
    lower, higher, weight = make_inputs(key, B, N, D)
    ref = jnp.concatenate([lower, higher], axis=-1) @ weight.T

    # 1) Default (compute dtype == input dtype == f32): must match tightly.
    out_f32 = jax.block_until_ready(concatenation_resolver(lower, higher, weight))
    assert out_f32.shape == (B, N, D)
    assert jnp.allclose(out_f32, ref, atol=1e-5, rtol=1e-5), "f32 mismatch vs reference"

    # 2) Opt-in bf16 compute path (f32 MXU accumulation): looser tolerance.
    out_bf16 = jax.block_until_ready(
        concatenation_resolver(lower, higher, weight, compute_dtype=jnp.bfloat16))
    assert out_bf16.shape == (B, N, D)
    assert jnp.allclose(out_bf16, ref, atol=5e-2, rtol=5e-2), "bf16 mismatch vs reference"

    # 3) Ragged shape (exercises un-padded M with masked writeback and D%128!=0 padding).
    B2, N2, D2 = 3, 7, 48
    lo2, hi2, w2 = make_inputs(jax.random.PRNGKey(1), B2, N2, D2)
    ref2 = jnp.concatenate([lo2, hi2], axis=-1) @ w2.T
    out2 = jax.block_until_ready(concatenation_resolver(lo2, hi2, w2))
    assert out2.shape == (B2, N2, D2)
    assert jnp.allclose(out2, ref2, atol=1e-5, rtol=1e-5), "ragged-shape mismatch"

    print("KERNEL_OK")
</pallas_src>

<mosaic_0001>
module attributes {stable_mosaic.version = 11 : i64} {
  func.func @_concat_resolver_kernel(%arg0: i32, %arg1: i32, %arg2: i32, %arg3: memref<16x128xf32, #tpu.memory_space<vmem>>, %arg4: memref<16x128xf32, #tpu.memory_space<vmem>>, %arg5: memref<128x128xf32, #tpu.memory_space<vmem>>, %arg6: memref<128x128xf32, #tpu.memory_space<vmem>>, %arg7: memref<16x128xf32, #tpu.memory_space<vmem>>, %arg8: memref<16x128xf32, #tpu.memory_space<vmem>>) attributes {dimension_semantics = [#tpu.dimension_semantics<parallel>, #tpu.dimension_semantics<parallel>, #tpu.dimension_semantics<arbitrary>], iteration_bounds = array<i64: 1, 1, 1>, scalar_prefetch = 0 : i64, scratch_operands = 1 : i64, tpu.core_type = #tpu.core_type<tc>, window_params = [{transform_indices = @transform_0, window_bounds = array<i64: 16, 128>}, {transform_indices = @transform_1, window_bounds = array<i64: 16, 128>}, {transform_indices = @transform_2, window_bounds = array<i64: 128, 128>}, {transform_indices = @transform_3, window_bounds = array<i64: 128, 128>}, {transform_indices = @transform_4, window_bounds = array<i64: 16, 128>}]} {
    %c0_i32 = arith.constant 0 : i32
    %0 = arith.cmpi eq, %arg2, %c0_i32 : i32
    %1 = arith.extui %0 : i1 to i32
    %c0_i32_0 = arith.constant 0 : i32
    %2 = arith.cmpi ne, %1, %c0_i32_0 : i32
    scf.if %2 {
      %cst_19 = arith.constant 0.000000e+00 : f32
      %18 = vector.broadcast %cst_19 : f32 to vector<16x128xf32>
      %c0_20 = arith.constant 0 : index
      %c0_21 = arith.constant 0 : index
      %19 = vector.load %arg8[%c0_20, %c0_21] : memref<16x128xf32, #tpu.memory_space<vmem>>, vector<16x128xf32>
      tpu.vector_store %arg8[%c0_20, %c0_21], %18 {strides = array<i32>} : memref<16x128xf32, #tpu.memory_space<vmem>>, vector<16x128xf32>,
    } else {
    }
    %c0 = arith.constant 0 : index
    %c0_1 = arith.constant 0 : index
    %3 = vector.load %arg3[%c0, %c0_1] : memref<16x128xf32, #tpu.memory_space<vmem>>, vector<16x128xf32>
    %c0_2 = arith.constant 0 : index
    %c0_3 = arith.constant 0 : index
    %4 = vector.load %arg4[%c0_2, %c0_3] : memref<16x128xf32, #tpu.memory_space<vmem>>, vector<16x128xf32>
    %c0_4 = arith.constant 0 : index
    %c0_5 = arith.constant 0 : index
    %5 = vector.load %arg8[%c0_4, %c0_5] : memref<16x128xf32, #tpu.memory_space<vmem>>, vector<16x128xf32>
    %c0_6 = arith.constant 0 : index
    %c0_7 = arith.constant 0 : index
    %6 = vector.load %arg5[%c0_6, %c0_7] : memref<128x128xf32, #tpu.memory_space<vmem>>, vector<128x128xf32>
    %cst = arith.constant dense<0.000000e+00> : vector<16x128xf32>
    %7 = tpu.matmul %3, %6, %cst {dimension_numbers = #tpu.dot_dimension_numbers<[1], [1], [0], [0], [0, 0, 1, 0], [], []>} : vector<16x128xf32>, vector<128x128xf32>, vector<16x128xf32> -> vector<16x128xf32>
    %8 = arith.addf %5, %7 : vector<16x128xf32>
    %c0_8 = arith.constant 0 : index
    %c0_9 = arith.constant 0 : index
    %9 = vector.load %arg8[%c0_8, %c0_9] : memref<16x128xf32, #tpu.memory_space<vmem>>, vector<16x128xf32>
    tpu.vector_store %arg8[%c0_8, %c0_9], %8 {strides = array<i32>} : memref<16x128xf32, #tpu.memory_space<vmem>>, vector<16x128xf32>,
    %c0_10 = arith.constant 0 : index
    %c0_11 = arith.constant 0 : index
    %10 = vector.load %arg8[%c0_10, %c0_11] : memref<16x128xf32, #tpu.memory_space<vmem>>, vector<16x128xf32>
    %c0_12 = arith.constant 0 : index
    %c0_13 = arith.constant 0 : index
    %11 = vector.load %arg6[%c0_12, %c0_13] : memref<128x128xf32, #tpu.memory_space<vmem>>, vector<128x128xf32>
    %cst_14 = arith.constant dense<0.000000e+00> : vector<16x128xf32>
    %12 = tpu.matmul %4, %11, %cst_14 {dimension_numbers = #tpu.dot_dimension_numbers<[1], [1], [0], [0], [0, 0, 1, 0], [], []>} : vector<16x128xf32>, vector<128x128xf32>, vector<16x128xf32> -> vector<16x128xf32>
    %13 = arith.addf %10, %12 : vector<16x128xf32>
    %c0_15 = arith.constant 0 : index
    %c0_16 = arith.constant 0 : index
    %14 = vector.load %arg8[%c0_15, %c0_16] : memref<16x128xf32, #tpu.memory_space<vmem>>, vector<16x128xf32>
    tpu.vector_store %arg8[%c0_15, %c0_16], %13 {strides = array<i32>} : memref<16x128xf32, #tpu.memory_space<vmem>>, vector<16x128xf32>,
    %c0_i32_17 = arith.constant 0 : i32
    %15 = arith.cmpi eq, %arg2, %c0_i32_17 : i32
    %16 = arith.extui %15 : i1 to i32
    %c0_i32_18 = arith.constant 0 : i32
    %17 = arith.cmpi ne, %16, %c0_i32_18 : i32
    scf.if %17 {
      %c0_19 = arith.constant 0 : index
      %c0_20 = arith.constant 0 : index
      %18 = vector.load %arg8[%c0_19, %c0_20] : memref<16x128xf32, #tpu.memory_space<vmem>>, vector<16x128xf32>
      %c0_21 = arith.constant 0 : index
      %c0_22 = arith.constant 0 : index
      %19 = vector.load %arg7[%c0_21, %c0_22] : memref<16x128xf32, #tpu.memory_space<vmem>>, vector<16x128xf32>
      tpu.vector_store %arg7[%c0_21, %c0_22], %18 {strides = array<i32>} : memref<16x128xf32, #tpu.memory_space<vmem>>, vector<16x128xf32>,
    } else {
    }
    return
  }
  func.func @transform_0(%arg0: i32, %arg1: i32, %arg2: i32) -> (i32, i32) {
    %c0_i32 = arith.constant 0 : i32
    return %arg0, %arg2 : i32, i32
  }
  func.func @transform_1(%arg0: i32, %arg1: i32, %arg2: i32) -> (i32, i32) {
    %c0_i32 = arith.constant 0 : i32
    return %arg0, %arg2 : i32, i32
  }
  func.func @transform_2(%arg0: i32, %arg1: i32, %arg2: i32) -> (i32, i32) {
    %c0_i32 = arith.constant 0 : i32
    return %arg1, %arg2 : i32, i32
  }
  func.func @transform_3(%arg0: i32, %arg1: i32, %arg2: i32) -> (i32, i32) {
    %c0_i32 = arith.constant 0 : i32
    return %arg1, %arg2 : i32, i32
  }
  func.func @transform_4(%arg0: i32, %arg1: i32, %arg2: i32) -> (i32, i32) {
    %c0_i32 = arith.constant 0 : i32
    return %arg0, %arg1 : i32, i32
  }
}

</mosaic_0001>

<llo_original>
// kernel: tpu_custom_call.1
$region0: #{tpu_custom_call.1}
  #allocation0 [shape = 'u32[]', space=smem, size = 0x4, offset = 0x4, fixed_abs, tag = 'smem constant byte address 0x4 - core index']
  #allocation1 [shape = 'u32[144,128]{1,0:T(1,128)}', space=vmem, size = 0x12000, scoped, tag = 'internal scratch']
  #allocation2 [shape = 'f32[16,128]{1,0:T(8,128)}', space=vmem, size = 0x2000, scoped, tag = 'scratch operand']
  %s0 = inlined_call_operand.hbm [shape: f32[16,128], index: 0, kind: input, shape index: {}]
  %s1 = inlined_call_operand.hbm [shape: f32[16,128], index: 1, kind: input, shape index: {}]
  %s2 = inlined_call_operand.hbm [shape: f32[128,128], index: 2, kind: input, shape index: {}]
  %s3 = inlined_call_operand.hbm [shape: f32[128,128], index: 3, kind: input, shape index: {}]
  %s4 = inlined_call_operand.hbm [shape: f32[16,128], index: 4, kind: output, shape index: {}]
  %s5 = sld [smem:[#allocation0]]
  $region50: #{tpu_custom_call.1} parent=0
    _
  %s7 = ssub.s32 1, %s5
  %s8 = scalar_select 0, %s7, %s5
  $region1: #{tpu_custom_call.1} parent=0
    #allocation3 [shape = 'u8[8192]{0}', space=vmem, size = 0x2000, scoped, tag = 'input window, operand 0, single buffered']
    #allocation4 [shape = 's32[1]{0}', space=sflag, size = 0x4, scoped, tag = 'scoped memory for tpu_custom_call.1']
    #allocation5 [shape = 's32[1]{0}', space=sflag, size = 0x4, scoped, tag = 'scoped memory for tpu_custom_call.1']
    #allocation6 [shape = 'u8[8192]{0}', space=vmem, size = 0x2000, scoped, tag = 'input window, operand 1, single buffered']
    #allocation7 [shape = 's32[1]{0}', space=sflag, size = 0x4, scoped, tag = 'scoped memory for tpu_custom_call.1']
    #allocation8 [shape = 'u8[65536]{0}', space=vmem, size = 0x10000, scoped, tag = 'input window, operand 2, single buffered']
    #allocation9 [shape = 'u8[65536]{0}', space=vmem, size = 0x10000, scoped, tag = 'input window, operand 3, single buffered']
    #allocation10 [shape = 's32[1]{0}', space=sflag, size = 0x4, scoped, tag = 'scoped memory for tpu_custom_call.1']
    #allocation11 [shape = 'u8[8192]{0}', space=vmem, size = 0x2000, scoped, tag = 'output window, operand 0, single buffered']
    %9 = vsyncpa [#allocation4], 0
    %10 = vsyncpa [#allocation7], 0
    %11 = vsyncpa [#allocation10], 0
    %12 = vsyncpa [#allocation5], 0
    // Predicated region
    $region2: #{tpu_custom_call.1} parent=1 // pred_check
      _
    $region3: #{tpu_custom_call.1} parent=1 // pred_check_branch
      %14 = sbr.rel (0) target = $region5
    $region4: #{tpu_custom_call.1} parent=1 // pred_region
      %s16 = ssub.s32 256, 256
      %17 = vsyncadd [#allocation4], %s16
      %s18 = sshll.u32 [#allocation3], 4
      %s19 = int_to_ptr.vmem [resolvable:$true] %s18
      %24 = dma.hbm_to_vmem [thread:$0]  %s0, 256, %s19, [#allocation4], 128, 128, 8
    $region5: #{tpu_custom_call.1} parent=1 // pred_fallthru
      _
    // Predicated region
    $region6: #{tpu_custom_call.1} parent=1 // pred_check
      _
    $region7: #{tpu_custom_call.1} parent=1 // pred_check_branch
      %26 = sbr.rel (0) target = $region9
    $region8: #{tpu_custom_call.1} parent=1 // pred_region
      %s28 = ssub.s32 256, 256
      %29 = vsyncadd [#allocation7], %s28
      %s30 = sshll.u32 [#allocation6], 4
      %s31 = int_to_ptr.vmem [resolvable:$true] %s30
      %36 = dma.hbm_to_vmem [thread:$0]  %s1, 256, %s31, [#allocation7], 128, 128, 8
    $region9: #{tpu_custom_call.1} parent=1 // pred_fallthru
      _
    // Predicated region
    $region10: #{tpu_custom_call.1} parent=1 // pred_check
      _
    $region11: #{tpu_custom_call.1} parent=1 // pred_check_branch
      %38 = sbr.rel (0) target = $region13
    $region12: #{tpu_custom_call.1} parent=1 // pred_region
      %s40 = ssub.s32 2048, 2048
      %41 = vsyncadd [#allocation7], %s40
      %s42 = sshll.u32 [#allocation8], 4
      %s43 = int_to_ptr.vmem [resolvable:$true] %s42
      %48 = dma.hbm_to_vmem [thread:$0]  %s2, 2048, %s43, [#allocation7], 128, 128, 8
    $region13: #{tpu_custom_call.1} parent=1 // pred_fallthru
      _
    // Predicated region
    $region14: #{tpu_custom_call.1} parent=1 // pred_check
      _
    $region15: #{tpu_custom_call.1} parent=1 // pred_check_branch
      %50 = sbr.rel (0) target = $region17
    $region16: #{tpu_custom_call.1} parent=1 // pred_region
      %s52 = ssub.s32 2048, 2048
      %53 = vsyncadd [#allocation10], %s52
      %s54 = sshll.u32 [#allocation9], 4
      %s55 = int_to_ptr.vmem [resolvable:$true] %s54
      %60 = dma.hbm_to_vmem [thread:$0]  %s3, 2048, %s55, [#allocation10], 128, 128, 8
    $region17: #{tpu_custom_call.1} parent=1 // pred_fallthru
      _
    // Predicated region
    $region18: #{tpu_custom_call.1} parent=1 // pred_check
      _
    $region19: #{tpu_custom_call.1} parent=1 // pred_check_branch
      %62 = sbr.rel (0) target = $region21
    $region20: #{tpu_custom_call.1} parent=1 // pred_region
      %63 = dma.done [#allocation4], 256
    $region21: #{tpu_custom_call.1} parent=1 // pred_fallthru
      _
    // Predicated region
    $region22: #{tpu_custom_call.1} parent=1 // pred_check
      _
    $region23: #{tpu_custom_call.1} parent=1 // pred_check_branch
      %65 = sbr.rel (0) target = $region25
    $region24: #{tpu_custom_call.1} parent=1 // pred_region
      %66 = dma.done [#allocation7], 256
    $region25: #{tpu_custom_call.1} parent=1 // pred_fallthru
      _
    // Predicated region
    $region26: #{tpu_custom_call.1} parent=1 // pred_check
      _
    $region27: #{tpu_custom_call.1} parent=1 // pred_check_branch
      %68 = sbr.rel (0) target = $region29
    $region28: #{tpu_custom_call.1} parent=1 // pred_region
      %69 = dma.done [#allocation7], 2048
    $region29: #{tpu_custom_call.1} parent=1 // pred_fallthru
      _
    // Predicated region
    $region30: #{tpu_custom_call.1} parent=1 // pred_check
      _
    $region31: #{tpu_custom_call.1} parent=1 // pred_check_branch
      %71 = sbr.rel (0) target = $region33
    $region32: #{tpu_custom_call.1} parent=1 // pred_region
      %72 = dma.done [#allocation10], 2048
    $region33: #{tpu_custom_call.1} parent=1 // pred_fallthru
      _
    %p73 = scmp.eq.s32.totalorder 0, 0
    // Predicated region
    $region34: #{tpu_custom_call.1} parent=1 // pred_check
      %p74 = pneg %p73
    $region35: #{tpu_custom_call.1} parent=1 // pred_check_branch
      %76 = sbr.rel (%p74) target = $region37
    $region36: #{tpu_custom_call.1} parent=1 // pred_region
      %77 = vst [vmem:[#allocation2] sm:$0xff] 0.0
      %78 = vst [vmem:[#allocation2 + $0x8] sm:$0xff] 0.0
    $region37: #{tpu_custom_call.1} parent=1 // pred_fallthru
      _
    %v79 = vld [vmem:[#allocation3] sm:$0xff]
    %v80 = vld [vmem:[#allocation3 + $0x8] sm:$0xff]
    %v81 = vld [vmem:[#allocation6] sm:$0xff]
    %v82 = vld [vmem:[#allocation6 + $0x8] sm:$0xff]
    %v83 = vld [vmem:[#allocation2] sm:$0xff]
    %v84 = vld [vmem:[#allocation2 + $0x8] sm:$0xff]
    %v85 = vld [vmem:[#allocation8] sm:$0xff]
    %v86 = vld [vmem:[#allocation8 + $0x8] sm:$0xff]
    %v87 = vld [vmem:[#allocation8 + $0x10] sm:$0xff]
    %v88 = vld [vmem:[#allocation8 + $0x18] sm:$0xff]
    %v89 = vld [vmem:[#allocation8 + $0x20] sm:$0xff]
    %v90 = vld [vmem:[#allocation8 + $0x28] sm:$0xff]
    %v91 = vld [vmem:[#allocation8 + $0x30] sm:$0xff]
    %v92 = vld [vmem:[#allocation8 + $0x38] sm:$0xff]
    %v93 = vld [vmem:[#allocation8 + $0x40] sm:$0xff]
    %v94 = vld [vmem:[#allocation8 + $0x48] sm:$0xff]
    %v95 = vld [vmem:[#allocation8 + $0x50] sm:$0xff]
    %v96 = vld [vmem:[#allocation8 + $0x58] sm:$0xff]
    %v97 = vld [vmem:[#allocation8 + $0x60] sm:$0xff]
    %v98 = vld [vmem:[#allocation8 + $0x68] sm:$0xff]
    %v99 = vld [vmem:[#allocation8 + $0x70] sm:$0xff]
    %v100 = vld [vmem:[#allocation8 + $0x78] sm:$0xff]
    %101 = vmatprep.subr.mxu0 0.0
    %102 = vmatpush1.xpose.msra.mxu0 %v100
    %103 = vmatprep.subr.mxu0 0.0
    %104 = vmatpush1.xpose.msra.mxu0 %v99
    %105 = vmatprep.subr.mxu0 0.0
    %106 = vmatpush1.xpose.msra.mxu0 %v98
    %107 = vmatprep.subr.mxu0 0.0
    %108 = vmatpush1.xpose.msra.mxu0 %v97
    %109 = vmatprep.subr.mxu0 0.0
    %110 = vmatpush1.xpose.msra.mxu0 %v96
    %111 = vmatprep.subr.mxu0 0.0
    %112 = vmatpush1.xpose.msra.mxu0 %v95
    %113 = vmatprep.subr.mxu0 0.0
    %114 = vmatpush1.xpose.msra.mxu0 %v94
    %115 = vmatprep.subr.mxu0 0.0
    %116 = vmatpush1.xpose.msra.mxu0 %v93
    %117 = vmatprep.subr.mxu0 0.0
    %118 = vmatpush1.xpose.msra.mxu0 %v92
    %119 = vmatprep.subr.mxu0 0.0
    %120 = vmatpush1.xpose.msra.mxu0 %v91
    %121 = vmatprep.subr.mxu0 0.0
    %122 = vmatpush1.xpose.msra.mxu0 %v90
    %123 = vmatprep.subr.mxu0 0.0
    %124 = vmatpush1.xpose.msra.mxu0 %v89
    %125 = vmatprep.subr.mxu0 0.0
    %126 = vmatpush1.xpose.msra.mxu0 %v88
    %127 = vmatprep.subr.mxu0 0.0
    %128 = vmatpush1.xpose.msra.mxu0 %v87
    %129 = vmatprep.subr.mxu0 0.0
    %130 = vmatpush1.xpose.msra.mxu0 %v86
    %131 = vmatprep.subr.mxu0 0.0
    %132 = vmatpush1.xpose.msra.mxu0 %v85
    %133 = vmatprep.subr.mxu0 0.0
    %134 = vmatpush2.xpose.msra.mxu0 0.0
    %135 = vmatprep.subr.mxu0 0.0
    %136 = vmatpush2.xpose.msra.mxu0 0.0
    %137 = vmatprep.subr.mxu0 0.0
    %138 = vmatpush2.xpose.msra.mxu0 0.0
    %139 = vmatprep.subr.mxu0 0.0
    %140 = vmatpush2.xpose.msra.mxu0 0.0
    %141 = vmatprep.subr.mxu0 0.0
    %142 = vmatpush2.xpose.msra.mxu0 0.0
    %143 = vmatprep.subr.mxu0 0.0
    %144 = vmatpush2.xpose.msra.mxu0 0.0
    %145 = vmatprep.subr.mxu0 0.0
    %146 = vmatpush2.xpose.msra.mxu0 0.0
    %147 = vmatprep.subr.mxu0 0.0
    %148 = vmatpush2.xpose.msra.mxu0 0.0
    %149 = vmatprep.subr.mxu0 0.0
    %150 = vmatpush2.xpose.msra.mxu0 0.0
    %151 = vmatprep.subr.mxu0 0.0
    %152 = vmatpush2.xpose.msra.mxu0 0.0
    %153 = vmatprep.subr.mxu0 0.0
    %154 = vmatpush2.xpose.msra.mxu0 0.0
    %155 = vmatprep.subr.mxu0 0.0
    %156 = vmatpush2.xpose.msra.mxu0 0.0
    %157 = vmatprep.subr.mxu0 0.0
    %158 = vmatpush2.xpose.msra.mxu0 0.0
    %159 = vmatprep.subr.mxu0 0.0
    %160 = vmatpush2.xpose.msra.mxu0 0.0
    %161 = vmatprep.subr.mxu0 0.0
    %162 = vmatpush2.xpose.msra.mxu0 0.0
    %163 = vmatprep.subr.mxu0 0.0
    %164 = vmatpush2.xpose.msra.mxu0 0.0
    %165 = vmatprep.mubr.f32.mxu0 0.0
    %166 = vmatmul.mubr.f32.gmra.mxu0 %v79
    %v167 = vpop.f32.mrf.mxu0
    %v168 = vadd.f32 0.0, %v167
    %v169 = vpop.f32.mrf.mxu0
    %170 = vmatprep.mubr.f32.mxu0 0.0
    %171 = vmatmul.mubr.f32.gmra.mxu0 %v80
    %v172 = vpop.f32.mrf.mxu0
    %v173 = vadd.f32 0.0, %v172
    %v174 = vpop.f32.mrf.mxu0
    %175 = vdwg.mxu0
    %v176 = vadd.f32 %v83, %v168
    %v177 = vadd.f32 %v84, %v173
    %178 = vst [vmem:[#allocation2] sm:$0xff] %v176
    %179 = vst [vmem:[#allocation2 + $0x8] sm:$0xff] %v177
    %v180 = vld [vmem:[#allocation2] sm:$0xff]
    %v181 = vld [vmem:[#allocation2 + $0x8] sm:$0xff]
    %v182 = vld [vmem:[#allocation9] sm:$0xff]
    %v183 = vld [vmem:[#allocation9 + $0x8] sm:$0xff]
    %v184 = vld [vmem:[#allocation9 + $0x10] sm:$0xff]
    %v185 = vld [vmem:[#allocation9 + $0x18] sm:$0xff]
    %v186 = vld [vmem:[#allocation9 + $0x20] sm:$0xff]
    %v187 = vld [vmem:[#allocation9 + $0x28] sm:$0xff]
    %v188 = vld [vmem:[#allocation9 + $0x30] sm:$0xff]
    %v189 = vld [vmem:[#allocation9 + $0x38] sm:$0xff]
    %v190 = vld [vmem:[#allocation9 + $0x40] sm:$0xff]
    %v191 = vld [vmem:[#allocation9 + $0x48] sm:$0xff]
    %v192 = vld [vmem:[#allocation9 + $0x50] sm:$0xff]
    %v193 = vld [vmem:[#allocation9 + $0x58] sm:$0xff]
    %v194 = vld [vmem:[#allocation9 + $0x60] sm:$0xff]
    %v195 = vld [vmem:[#allocation9 + $0x68] sm:$0xff]
    %v196 = vld [vmem:[#allocation9 + $0x70] sm:$0xff]
    %v197 = vld [vmem:[#allocation9 + $0x78] sm:$0xff]
    %198 = vmatprep.subr.mxu0 0.0
    %199 = vmatpush1.xpose.msra.mxu0 %v197
    %200 = vmatprep.subr.mxu0 0.0
    %201 = vmatpush1.xpose.msra.mxu0 %v196
    %202 = vmatprep.subr.mxu0 0.0
    %203 = vmatpush1.xpose.msra.mxu0 %v195
    %204 = vmatprep.subr.mxu0 0.0
    %205 = vmatpush1.xpose.msra.mxu0 %v194
    %206 = vmatprep.subr.mxu0 0.0
    %207 = vmatpush1.xpose.msra.mxu0 %v193
    %208 = vmatprep.subr.mxu0 0.0
    %209 = vmatpush1.xpose.msra.mxu0 %v192
    %210 = vmatprep.subr.mxu0 0.0
    %211 = vmatpush1.xpose.msra.mxu0 %v191
    %212 = vmatprep.subr.mxu0 0.0
    %213 = vmatpush1.xpose.msra.mxu0 %v190
    %214 = vmatprep.subr.mxu0 0.0
    %215 = vmatpush1.xpose.msra.mxu0 %v189
    %216 = vmatprep.subr.mxu0 0.0
    %217 = vmatpush1.xpose.msra.mxu0 %v188
    %218 = vmatprep.subr.mxu0 0.0
    %219 = vmatpush1.xpose.msra.mxu0 %v187
    %220 = vmatprep.subr.mxu0 0.0
    %221 = vmatpush1.xpose.msra.mxu0 %v186
    %222 = vmatprep.subr.mxu0 0.0
    %223 = vmatpush1.xpose.msra.mxu0 %v185
    %224 = vmatprep.subr.mxu0 0.0
    %225 = vmatpush1.xpose.msra.mxu0 %v184
    %226 = vmatprep.subr.mxu0 0.0
    %227 = vmatpush1.xpose.msra.mxu0 %v183
    %228 = vmatprep.subr.mxu0 0.0
    %229 = vmatpush1.xpose.msra.mxu0 %v182
    %230 = vmatprep.subr.mxu0 0.0
    %231 = vmatpush2.xpose.msra.mxu0 0.0
    %232 = vmatprep.subr.mxu0 0.0
    %233 = vmatpush2.xpose.msra.mxu0 0.0
    %234 = vmatprep.subr.mxu0 0.0
    %235 = vmatpush2.xpose.msra.mxu0 0.0
    %236 = vmatprep.subr.mxu0 0.0
    %237 = vmatpush2.xpose.msra.mxu0 0.0
    %238 = vmatprep.subr.mxu0 0.0
    %239 = vmatpush2.xpose.msra.mxu0 0.0
    %240 = vmatprep.subr.mxu0 0.0
    %241 = vmatpush2.xpose.msra.mxu0 0.0
    %242 = vmatprep.subr.mxu0 0.0
    %243 = vmatpush2.xpose.msra.mxu0 0.0
    %244 = vmatprep.subr.mxu0 0.0
    %245 = vmatpush2.xpose.msra.mxu0 0.0
    %246 = vmatprep.subr.mxu0 0.0
    %247 = vmatpush2.xpose.msra.mxu0 0.0
    %248 = vmatprep.subr.mxu0 0.0
    %249 = vmatpush2.xpose.msra.mxu0 0.0
    %250 = vmatprep.subr.mxu0 0.0
    %251 = vmatpush2.xpose.msra.mxu0 0.0
    %252 = vmatprep.subr.mxu0 0.0
    %253 = vmatpush2.xpose.msra.mxu0 0.0
    %254 = vmatprep.subr.mxu0 0.0
    %255 = vmatpush2.xpose.msra.mxu0 0.0
    %256 = vmatprep.subr.mxu0 0.0
    %257 = vmatpush2.xpose.msra.mxu0 0.0
    %258 = vmatprep.subr.mxu0 0.0
    %259 = vmatpush2.xpose.msra.mxu0 0.0
    %260 = vmatprep.subr.mxu0 0.0
    %261 = vmatpush2.xpose.msra.mxu0 0.0
    %262 = vmatprep.mubr.f32.mxu0 0.0
    %263 = vmatmul.mubr.f32.gmra.mxu0 %v81
    %v264 = vpop.f32.mrf.mxu0
    %v265 = vadd.f32 0.0, %v264
    %v266 = vpop.f32.mrf.mxu0
    %267 = vmatprep.mubr.f32.mxu0 0.0
    %268 = vmatmul.mubr.f32.gmra.mxu0 %v82
    %v269 = vpop.f32.mrf.mxu0
    %v270 = vadd.f32 0.0, %v269
    %v271 = vpop.f32.mrf.mxu0
    %272 = vdwg.mxu0
    %v273 = vadd.f32 %v180, %v265
    %v274 = vadd.f32 %v181, %v270
    %275 = vst [vmem:[#allocation2] sm:$0xff] %v273
    %276 = vst [vmem:[#allocation2 + $0x8] sm:$0xff] %v274
    // Predicated region
    $region38: #{tpu_custom_call.1} parent=1 // pred_check
      %p277 = pneg %p73
    $region39: #{tpu_custom_call.1} parent=1 // pred_check_branch
      %279 = sbr.rel (%p277) target = $region41
    $region40: #{tpu_custom_call.1} parent=1 // pred_region
      %v280 = vld [vmem:[#allocation2] sm:$0xff]
      %v281 = vld [vmem:[#allocation2 + $0x8] sm:$0xff]
      %282 = vst [vmem:[#allocation11] sm:$0xff] %v280
      %283 = vst [vmem:[#allocation11 + $0x8] sm:$0xff] %v281
    $region41: #{tpu_custom_call.1} parent=1 // pred_fallthru
      _
    // Predicated region
    $region42: #{tpu_custom_call.1} parent=1 // pred_check
      _
    $region43: #{tpu_custom_call.1} parent=1 // pred_check_branch
      %285 = sbr.rel (0) target = $region45
    $region44: #{tpu_custom_call.1} parent=1 // pred_region
      %s287 = ssub.s32 256, 256
      %288 = vsyncadd [#allocation5], %s287
      %s289 = sshll.u32 [#allocation11], 4
      %s290 = int_to_ptr.vmem [resolvable:$true] %s289
      %295 = dma.vmem_to_hbm [thread:$0]  %s290, 256, %s4, [#allocation5], 128, 128, 8
    $region45: #{tpu_custom_call.1} parent=1 // pred_fallthru
      _
    // Predicated region
    $region46: #{tpu_custom_call.1} parent=1 // pred_check
      _
    $region47: #{tpu_custom_call.1} parent=1 // pred_check_branch
      %297 = sbr.rel (0) target = $region49
    $region48: #{tpu_custom_call.1} parent=1 // pred_region
      %298 = dma.done [#allocation5], 256
    $region49: #{tpu_custom_call.1} parent=1 // pred_fallthru
      _
    %299 = vsyncpa [#allocation4], 1
    %300 = vsyncpa [#allocation7], 1
    %301 = vsyncpa [#allocation10], 1
    %302 = vsyncpa [#allocation5], 1

</llo_original>
